<compile_context>
chip_gen: v7x
topology: tpu7x:2x2x1
jax: 0.10.0
libtpu: 0.0.40
codegen_flags: <defaults>
</compile_context>

<pallas_src>
import jax
import jax.numpy as jnp
from jax.experimental import pallas as pl
from jax.experimental.pallas import tpu as pltpu


# ----------------------------- helpers --------------------------------------


def _round_up(x, m):
    return (x + m - 1) // m * m


def _vmem_capacity_bytes():
    """Physical VMEM per TensorCore; conservative fallback if the query is unavailable."""
    try:
        info = pltpu.get_tpu_info()
        cap = int(getattr(info, "vmem_capacity_bytes", 0) or 0)
        if cap > 0:
            return cap
    except Exception:
        pass
    return 64 * 1024 * 1024  # v7x-sized fallback (smallest of v5e/v6e/v7x)


_INV_SQRT2 = 0.7071067811865476
_SQRT_2_OVER_PI = 0.7978845608028654


def _gelu_erf(x):
    """torch.nn.GELU default: 0.5*x*(1 + erf(x/sqrt(2))).

    erf via Abramowitz & Stegun 7.1.26 (|err| < 1.5e-7).  The divide is pushed to the EUP
    (pl.reciprocal approx) so only the short polynomial lands on the VALU slot.
    """
    z = x * _INV_SQRT2
    a = jnp.abs(z)
    t = pl.reciprocal(1.0 + 0.3275911 * a, approx=True)
    poly = t * (0.254829592
                + t * (-0.284496736
                       + t * (1.421413741
                              + t * (-1.453152027 + t * 1.061405429))))
    erf_abs = 1.0 - poly * jnp.exp(-a * a)
    erf = jnp.where(z < 0.0, -erf_abs, erf_abs)
    return 0.5 * x * (1.0 + erf)


def _gelu_tanh(x):
    """Cheaper tanh-form GELU (~6 VALU ops + 1 EUP tanh); |err| vs exact erf < 1e-3,
    below bf16 noise -- preferred on compute-bound v6e/v7x."""
    return 0.5 * x * (1.0 + jnp.tanh(_SQRT_2_OVER_PI * (x + 0.044715 * x * x * x)))


_GELU = {"erf": _gelu_erf, "tanh": _gelu_tanh}


# ----------------------------- kernel ----------------------------------------


def _make_mlp_kernel(resident, use_scratch, gelu_fn):
    """Fused fc1 + GELU + fc2 for one (tm)-row token tile.

    Grid = (token tiles, hidden slices); the hidden (reduction) axis is last and the fc2
    contraction is accumulated into a resident f32 block (the output itself when f32).
      x_ref : (tm, C)       bf16
      w1_ref: (nj|1, C, th) bf16   b1_ref: (nj|1, 1, th) f32
      w2_ref: (nj|1, th,Co) bf16   b2_ref: (1, Co)       f32
      o_ref : (tm, Co)      out_dtype
    """
    def kernel(x_ref, w1_ref, b1_ref, w2_ref, b2_ref, o_ref, *scratch):
        acc_ref = scratch[0] if use_scratch else o_ref
        j = pl.program_id(1)
        jj = j if resident else 0          # resident: full weights in VMEM, slice in-kernel

        @pl.when(j == 0)
        def _init():
            acc_ref[...] = jnp.zeros_like(acc_ref)

        w1 = w1_ref[jj]                    # (C, th)   bf16
        b1 = b1_ref[jj]                    # (1, th)   f32
        w2 = w2_ref[jj]                    # (th, Co)  bf16

        # fc1 slice on the MXU (bf16 operands, f32 accumulation); bias + GELU in f32.
        h = jnp.dot(x_ref[...], w1, preferred_element_type=jnp.float32)
        h = gelu_fn(h + b1)

        # fc2 partial contraction over this hidden slice, accumulated in f32.
        acc_ref[...] += jnp.dot(h.astype(w2.dtype), w2,
                                preferred_element_type=jnp.float32)

        @pl.when(j == pl.num_programs(1) - 1)
        def _finalize():
            o_ref[...] = (acc_ref[...] + b2_ref[...]).astype(o_ref.dtype)

    return kernel


# ----------------------------- weight prep (cacheable) ------------------------


def prepare_mlp_params(w1, b1, w2, b2, *, th, compute_dtype=jnp.bfloat16):
    """One-time weight plumbing (transpose, cast, pad, hidden-slice reshape).

    nn.Linear convention: w1 (hidden, C), b1 (hidden,), w2 (out, hidden), b2 (out,).
    Returns kernel layouts: w1p (nj,C,th) bf16, b1p (nj,1,th) f32, w2p (nj,th,Co) bf16,
    b2p (1,Co) f32.  In a real model cache this result across forward calls.
    """
    Hf, C = w1.shape
    Co, Hf2 = w2.shape
    assert Hf2 == Hf and b1.shape == (Hf,) and b2.shape == (Co,)
    Hp = _round_up(Hf, th)
    nj = Hp // th

    w1t = w1.T.astype(compute_dtype)                     # (C, Hf)
    w2t = w2.T.astype(compute_dtype)                     # (Hf, Co)
    b1f = b1.astype(jnp.float32)
    if Hp != Hf:                                         # exact: GELU(0)=0 and padded W2 rows are 0
        w1t = jnp.pad(w1t, ((0, 0), (0, Hp - Hf)))
        w2t = jnp.pad(w2t, ((0, Hp - Hf), (0, 0)))
        b1f = jnp.pad(b1f, (0, Hp - Hf))

    w1p = w1t.reshape(C, nj, th).transpose(1, 0, 2)      # (nj, C, th)
    w2p = w2t.reshape(nj, th, Co)                        # (nj, th, Co)
    b1p = b1f.reshape(nj, 1, th)                         # (nj, 1, th)
    b2p = b2.reshape(1, Co).astype(jnp.float32)          # (1, Co)
    return w1p, b1p, w2p, b2p


# ----------------------------- config selection -------------------------------


def _pick_config(M, C, Hf, Co, cbytes, out_bytes, tm, th, resident):
    cap = _vmem_capacity_bytes()
    budget = int(cap * 0.70)              # leave headroom for compiler scratch / temporaries

    tm = 512 if tm is None else tm        # 256-512: fills 256-wide MXUs, raises arithmetic intensity
    tm = max(16, min(_round_up(tm, 16), _round_up(M, 16)))
    th = 1024 if th is None else th       # amortizes per-step overhead & accumulator RMW
    th = max(128, min(_round_up(th, 128), _round_up(Hf, 128)))

    def vmem_est(tm_, th_, resident_):
        Hp_ = _round_up(Hf, th_)
        if resident_:
            # full weights (pipeline allocator still reserves 2 buffers; only one is filled
            # because the index_map is constant).
            w = 2 * ((C * Hp_ + Hp_ * Co) * cbytes + Hp_ * 4)
        else:
            # double-buffered streamed hidden slices
            w = 2 * ((C * th_ + th_ * Co) * cbytes + th_ * 4)
        io = 2 * tm_ * C * cbytes + 2 * tm_ * Co * out_bytes
        acc = tm_ * Co * 4 if out_bytes != 4 else 0
        tmp = 3 * tm_ * th_ * 4           # f32 h + bf16 copy + fusion temps
        return w + io + acc + tmp + (1 << 20)

    if resident is None:
        resident = vmem_est(tm, th, True) <= budget
    if not resident:
        while vmem_est(tm, th, False) > budget and th > 128:
            th = max(128, _round_up(th // 2, 128))
        while vmem_est(tm, th, False) > budget and tm > 128:
            tm = max(128, _round_up(tm // 2, 16))

    vmem_limit = int(cap * 0.85)
    return tm, th, resident, vmem_limit


# ----------------------------- wrapper ---------------------------------------


def mlp_forward(x, w1, b1, w2, b2, *, tm=None, th=None, resident=None,
                gelu_impl="erf", compute_dtype=jnp.bfloat16, out_dtype=jnp.float32):
    """Pallas-backed Mlp.forward:  y = fc2(GELU(fc1(x))).

    x: (B, N, C).  Weights follow nn.Linear convention:
      w1: (hidden, C), b1: (hidden,), w2: (out, hidden), b2: (out,).
    """
    B, N, C = x.shape
    Hf, C_in = w1.shape
    Co = w2.shape[0]
    assert C_in == C
    M = B * N
    cbytes = jnp.dtype(compute_dtype).itemsize
    obytes = jnp.dtype(out_dtype).itemsize

    tm, th, resident, vmem_limit = _pick_config(M, C, Hf, Co, cbytes, obytes, tm, th, resident)
    Mp = _round_up(M, tm)
    Hp = _round_up(Hf, th)
    nj = Hp // th
    n_i = Mp // tm

    # NOTE: cache prepare_mlp_params across calls in a real model (pure weight plumbing).
    w1p, b1p, w2p, b2p = prepare_mlp_params(w1, b1, w2, b2, th=th, compute_dtype=compute_dtype)

    x2 = x.reshape(M, C).astype(compute_dtype)
    if Mp != M:
        x2 = jnp.pad(x2, ((0, Mp - M), (0, 0)))

    use_scratch = (jnp.dtype(out_dtype) != jnp.dtype(jnp.float32))
    kernel = _make_mlp_kernel(resident, use_scratch, _GELU[gelu_impl])

    if resident:
        # Whole (padded) weights live in VMEM with constant index_maps: DMA'd from HBM once
        # for the whole grid, never re-streamed per token tile; sliced in-kernel along hidden.
        w1_spec = pl.BlockSpec((nj, C, th), lambda i, j: (0, 0, 0))
        b1_spec = pl.BlockSpec((nj, 1, th), lambda i, j: (0, 0, 0))
        w2_spec = pl.BlockSpec((nj, th, Co), lambda i, j: (0, 0, 0))
    else:
        # Stream one hidden slice of W1/W2 per grid step (large tm keeps arithmetic intensity high).
        w1_spec = pl.BlockSpec((1, C, th), lambda i, j: (j, 0, 0))
        b1_spec = pl.BlockSpec((1, 1, th), lambda i, j: (j, 0, 0))
        w2_spec = pl.BlockSpec((1, th, Co), lambda i, j: (j, 0, 0))

    w_passes = 1 if resident else n_i
    cost = pl.CostEstimate(
        flops=2 * Mp * C * Hp + 2 * Mp * Hp * Co,
        transcendentals=Mp * Hp,
        bytes_accessed=(w_passes * ((C * Hp + Hp * Co) * cbytes + Hp * 4)
                        + Co * 4 + Mp * C * cbytes + Mp * Co * obytes),
    )

    out = pl.pallas_call(
        kernel,
        grid=(n_i, nj),
        in_specs=[
            pl.BlockSpec((tm, C), lambda i, j: (i, 0)),     # token tile (resident across j)
            w1_spec, b1_spec, w2_spec,
            pl.BlockSpec((1, Co), lambda i, j: (0, 0)),     # b2 (resident)
        ],
        out_specs=pl.BlockSpec((tm, Co), lambda i, j: (i, 0)),
        out_shape=jax.ShapeDtypeStruct((Mp, Co), out_dtype),
        scratch_shapes=[pltpu.VMEM((tm, Co), jnp.float32)] if use_scratch else [],
        compiler_params=pltpu.CompilerParams(
            dimension_semantics=("parallel", "arbitrary"),
            vmem_limit_bytes=vmem_limit),
        cost_estimate=cost,
    )(x2, w1p, b1p, w2p, b2p)

    return out[:M].reshape(B, N, Co)


# ----------------------------- reference -------------------------------------


def _reference(x, w1, b1, w2, b2):
    h = jnp.einsum("bnc,hc->bnh", x, w1) + b1
    h = jax.nn.gelu(h, approximate=False)               # torch.nn.GELU default (exact erf)
    return jnp.einsum("bnh,oh->bno", h, w2) + b2


# ----------------------------- main ------------------------------------------


if __name__ == "__main__":
    B, N, C, Hf = 2, 16, 64, 256                         # in_features=64, hidden=4*64

    key = jax.random.PRNGKey(0)
    kx, k1, kb1, k2, kb2 = jax.random.split(key, 5)
    x = jax.random.normal(kx, (B, N, C), dtype=jnp.float32)
    w1 = jax.random.normal(k1, (Hf, C), dtype=jnp.float32) * 0.1    # nn.Linear(C, Hf).weight
    b1 = jax.random.normal(kb1, (Hf,), dtype=jnp.float32) * 0.1     # nn.Linear(C, Hf).bias
    w2 = jax.random.normal(k2, (C, Hf), dtype=jnp.float32) * 0.1    # nn.Linear(Hf, C).weight
    b2 = jax.random.normal(kb2, (C,), dtype=jnp.float32) * 0.1      # nn.Linear(Hf, C).bias

    ref = _reference(x, w1, b1, w2, b2)

    # 1) Auto config: weights are VMEM-resident at these sizes (v5e/v6e-style path).
    out = jax.block_until_ready(mlp_forward(x, w1, b1, w2, b2))
    assert out.shape == (B, N, C)
    err = float(jnp.max(jnp.abs(out - ref)))
    # bf16 MXU operands -> loosened tolerance vs the pure-f32 reference.
    assert jnp.allclose(out, ref, atol=5e-2, rtol=5e-2), f"resident path max abs err {err}"

    # 2) Streaming path with multiple hidden slices (what very large models hit on v7x).
    out_s = jax.block_until_ready(mlp_forward(x, w1, b1, w2, b2, th=128, resident=False))
    err_s = float(jnp.max(jnp.abs(out_s - ref)))
    assert jnp.allclose(out_s, ref, atol=5e-2, rtol=5e-2), f"streaming path max abs err {err_s}"

    print("KERNEL_OK")
</pallas_src>

<mosaic_0001>
module attributes {stable_mosaic.version = 11 : i64} {
  func.func @kernel(%arg0: i32, %arg1: i32, %arg2: memref<32x64xbf16, #tpu.memory_space<vmem>>, %arg3: memref<1x64x256xbf16, #tpu.memory_space<vmem>>, %arg4: memref<1x1x256xf32, #tpu.memory_space<vmem>>, %arg5: memref<1x256x64xbf16, #tpu.memory_space<vmem>>, %arg6: memref<1x64xf32, #tpu.memory_space<vmem>>, %arg7: memref<32x64xf32, #tpu.memory_space<vmem>>) attributes {dimension_semantics = [#tpu.dimension_semantics<parallel>, #tpu.dimension_semantics<arbitrary>], iteration_bounds = array<i64: 1, 1>, scalar_prefetch = 0 : i64, scratch_operands = 0 : i64, tpu.core_type = #tpu.core_type<tc>, window_params = [{transform_indices = @transform_0, window_bounds = array<i64: 32, 64>}, {pipeline_mode = #tpu.pipeline_mode<synchronous>, transform_indices = @transform_1, window_bounds = array<i64: 1, 64, 256>}, {pipeline_mode = #tpu.pipeline_mode<synchronous>, transform_indices = @transform_2, window_bounds = array<i64: 1, 1, 256>}, {pipeline_mode = #tpu.pipeline_mode<synchronous>, transform_indices = @transform_3, window_bounds = array<i64: 1, 256, 64>}, {pipeline_mode = #tpu.pipeline_mode<synchronous>, transform_indices = @transform_4, window_bounds = array<i64: 1, 64>}, {transform_indices = @transform_5, window_bounds = array<i64: 32, 64>}]} {
    %c0_i32 = arith.constant 0 : i32
    %0 = arith.cmpi eq, %arg1, %c0_i32 : i32
    %1 = arith.extui %0 : i1 to i32
    %c0_i32_0 = arith.constant 0 : i32
    %2 = arith.cmpi ne, %1, %c0_i32_0 : i32
    scf.if %2 {
      %cst_29 = arith.constant 0.000000e+00 : f32
      %63 = vector.broadcast %cst_29 : f32 to vector<32x64xf32>
      %c0_30 = arith.constant 0 : index
      %c0_31 = arith.constant 0 : index
      %64 = vector.load %arg7[%c0_30, %c0_31] : memref<32x64xf32, #tpu.memory_space<vmem>>, vector<32x64xf32>
      tpu.vector_store %arg7[%c0_30, %c0_31], %63 {strides = array<i32>} : memref<32x64xf32, #tpu.memory_space<vmem>>, vector<32x64xf32>,
    } else {
    }
    %3 = arith.index_cast %arg1 : i32 to index
    %c0 = arith.constant 0 : index
    %c0_1 = arith.constant 0 : index
    %4 = vector.load %arg3[%3, %c0, %c0_1] : memref<1x64x256xbf16, #tpu.memory_space<vmem>>, vector<1x64x256xbf16>
    %5 = vector.shape_cast %4 : vector<1x64x256xbf16> to vector<64x256xbf16>
    %6 = arith.index_cast %arg1 : i32 to index
    %c0_2 = arith.constant 0 : index
    %c0_3 = arith.constant 0 : index
    %7 = vector.load %arg4[%6, %c0_2, %c0_3] : memref<1x1x256xf32, #tpu.memory_space<vmem>>, vector<1x1x256xf32>
    %8 = vector.shape_cast %7 : vector<1x1x256xf32> to vector<1x256xf32>
    %9 = arith.index_cast %arg1 : i32 to index
    %c0_4 = arith.constant 0 : index
    %c0_5 = arith.constant 0 : index
    %10 = vector.load %arg5[%9, %c0_4, %c0_5] : memref<1x256x64xbf16, #tpu.memory_space<vmem>>, vector<1x256x64xbf16>
    %11 = vector.shape_cast %10 : vector<1x256x64xbf16> to vector<256x64xbf16>
    %c0_6 = arith.constant 0 : index
    %c0_7 = arith.constant 0 : index
    %12 = vector.load %arg2[%c0_6, %c0_7] : memref<32x64xbf16, #tpu.memory_space<vmem>>, vector<32x64xbf16>
    %cst = arith.constant dense<0.000000e+00> : vector<32x256xf32>
    %13 = tpu.matmul %12, %5, %cst {dimension_numbers = #tpu.dot_dimension_numbers<[1], [0], [0], [1], [0, 0, 1, 1], [], []>} : vector<32x64xbf16>, vector<64x256xbf16>, vector<32x256xf32> -> vector<32x256xf32>
    %14 = vector.broadcast %8 : vector<1x256xf32> to vector<32x256xf32>
    %15 = arith.addf %13, %14 : vector<32x256xf32>
    %cst_8 = arith.constant 0.707106769 : f32
    %16 = vector.broadcast %cst_8 : f32 to vector<32x256xf32>
    %17 = arith.mulf %15, %16 : vector<32x256xf32>
    %18 = math.absf %17 : vector<32x256xf32>
    %cst_9 = arith.constant 0.327591091 : f32
    %19 = vector.broadcast %cst_9 : f32 to vector<32x256xf32>
    %20 = arith.mulf %19, %18 : vector<32x256xf32>
    %cst_10 = arith.constant 1.000000e+00 : f32
    %21 = vector.broadcast %cst_10 : f32 to vector<32x256xf32>
    %22 = arith.addf %21, %20 : vector<32x256xf32>
    %23 = tpu.reciprocal %22 {approx = true} : vector<32x256xf32> -> vector<32x256xf32>
    %cst_11 = arith.constant 1.06140542 : f32
    %24 = vector.broadcast %cst_11 : f32 to vector<32x256xf32>
    %25 = arith.mulf %23, %24 : vector<32x256xf32>
    %cst_12 = arith.constant -1.45315206 : f32
    %26 = vector.broadcast %cst_12 : f32 to vector<32x256xf32>
    %27 = arith.addf %26, %25 : vector<32x256xf32>
    %28 = arith.mulf %23, %27 : vector<32x256xf32>
    %cst_13 = arith.constant 1.42141378 : f32
    %29 = vector.broadcast %cst_13 : f32 to vector<32x256xf32>
    %30 = arith.addf %29, %28 : vector<32x256xf32>
    %31 = arith.mulf %23, %30 : vector<32x256xf32>
    %cst_14 = arith.constant -0.284496725 : f32
    %32 = vector.broadcast %cst_14 : f32 to vector<32x256xf32>
    %33 = arith.addf %32, %31 : vector<32x256xf32>
    %34 = arith.mulf %23, %33 : vector<32x256xf32>
    %cst_15 = arith.constant 0.254829586 : f32
    %35 = vector.broadcast %cst_15 : f32 to vector<32x256xf32>
    %36 = arith.addf %35, %34 : vector<32x256xf32>
    %37 = arith.mulf %23, %36 : vector<32x256xf32>
    %cst_16 = arith.constant 0.000000e+00 : f32
    %38 = vector.broadcast %cst_16 : f32 to vector<32x256xf32>
    %39 = arith.subf %38, %18 : vector<32x256xf32>
    %40 = arith.mulf %39, %18 : vector<32x256xf32>
    %41 = math.exp %40 : vector<32x256xf32>
    %42 = arith.mulf %37, %41 : vector<32x256xf32>
    %cst_17 = arith.constant 1.000000e+00 : f32
    %43 = vector.broadcast %cst_17 : f32 to vector<32x256xf32>
    %44 = arith.subf %43, %42 : vector<32x256xf32>
    %cst_18 = arith.constant 0.000000e+00 : f32
    %45 = vector.broadcast %cst_18 : f32 to vector<32x256xf32>
    %46 = arith.cmpf olt, %17, %45 : vector<32x256xf32>
    %cst_19 = arith.constant 0.000000e+00 : f32
    %47 = vector.broadcast %cst_19 : f32 to vector<32x256xf32>
    %48 = arith.subf %47, %44 : vector<32x256xf32>
    %49 = arith.select %46, %48, %44 : vector<32x256xi1>, vector<32x256xf32>
    %cst_20 = arith.constant 5.000000e-01 : f32
    %50 = vector.broadcast %cst_20 : f32 to vector<32x256xf32>
    %51 = arith.mulf %50, %15 : vector<32x256xf32>
    %cst_21 = arith.constant 1.000000e+00 : f32
    %52 = vector.broadcast %cst_21 : f32 to vector<32x256xf32>
    %53 = arith.addf %52, %49 : vector<32x256xf32>
    %54 = arith.mulf %51, %53 : vector<32x256xf32>
    %c0_22 = arith.constant 0 : index
    %c0_23 = arith.constant 0 : index
    %55 = vector.load %arg7[%c0_22, %c0_23] : memref<32x64xf32, #tpu.memory_space<vmem>>, vector<32x64xf32>
    %56 = arith.truncf %54 : vector<32x256xf32> to vector<32x256xbf16>
    %cst_24 = arith.constant dense<0.000000e+00> : vector<32x64xf32>
    %57 = tpu.matmul %56, %11, %cst_24 {dimension_numbers = #tpu.dot_dimension_numbers<[1], [0], [0], [1], [0, 0, 1, 1], [], []>} : vector<32x256xbf16>, vector<256x64xbf16>, vector<32x64xf32> -> vector<32x64xf32>
    %58 = arith.addf %55, %57 : vector<32x64xf32>
    %c0_25 = arith.constant 0 : index
    %c0_26 = arith.constant 0 : index
    %59 = vector.load %arg7[%c0_25, %c0_26] : memref<32x64xf32, #tpu.memory_space<vmem>>, vector<32x64xf32>
    tpu.vector_store %arg7[%c0_25, %c0_26], %58 {strides = array<i32>} : memref<32x64xf32, #tpu.memory_space<vmem>>, vector<32x64xf32>,
    %c0_i32_27 = arith.constant 0 : i32
    %60 = arith.cmpi eq, %arg1, %c0_i32_27 : i32
    %61 = arith.extui %60 : i1 to i32
    %c0_i32_28 = arith.constant 0 : i32
    %62 = arith.cmpi ne, %61, %c0_i32_28 : i32
    scf.if %62 {
      %c0_29 = arith.constant 0 : index
      %c0_30 = arith.constant 0 : index
      %63 = vector.load %arg7[%c0_29, %c0_30] : memref<32x64xf32, #tpu.memory_space<vmem>>, vector<32x64xf32>
      %c0_31 = arith.constant 0 : index
      %c0_32 = arith.constant 0 : index
      %64 = vector.load %arg6[%c0_31, %c0_32] : memref<1x64xf32, #tpu.memory_space<vmem>>, vector<1x64xf32>
      %65 = vector.broadcast %64 : vector<1x64xf32> to vector<32x64xf32>
      %66 = arith.addf %63, %65 : vector<32x64xf32>
      %c0_33 = arith.constant 0 : index
      %c0_34 = arith.constant 0 : index
      %67 = vector.load %arg7[%c0_33, %c0_34] : memref<32x64xf32, #tpu.memory_space<vmem>>, vector<32x64xf32>
      tpu.vector_store %arg7[%c0_33, %c0_34], %66 {strides = array<i32>} : memref<32x64xf32, #tpu.memory_space<vmem>>, vector<32x64xf32>,
    } else {
    }
    return
  }
  func.func @transform_0(%arg0: i32, %arg1: i32) -> (i32, i32) {
    %c0_i32 = arith.constant 0 : i32
    %c0_i32_0 = arith.constant 0 : i32
    return %arg0, %c0_i32 : i32, i32
  }
  func.func @transform_1(%arg0: i32, %arg1: i32) -> (i32, i32, i32) {
    %c0_i32 = arith.constant 0 : i32
    %c0_i32_0 = arith.constant 0 : i32
    %c0_i32_1 = arith.constant 0 : i32
    %c0_i32_2 = arith.constant 0 : i32
    return %c0_i32, %c0_i32_0, %c0_i32_1 : i32, i32, i32
  }
  func.func @transform_2(%arg0: i32, %arg1: i32) -> (i32, i32, i32) {
    %c0_i32 = arith.constant 0 : i32
    %c0_i32_0 = arith.constant 0 : i32
    %c0_i32_1 = arith.constant 0 : i32
    %c0_i32_2 = arith.constant 0 : i32
    return %c0_i32, %c0_i32_0, %c0_i32_1 : i32, i32, i32
  }
  func.func @transform_3(%arg0: i32, %arg1: i32) -> (i32, i32, i32) {
    %c0_i32 = arith.constant 0 : i32
    %c0_i32_0 = arith.constant 0 : i32
    %c0_i32_1 = arith.constant 0 : i32
    %c0_i32_2 = arith.constant 0 : i32
    return %c0_i32, %c0_i32_0, %c0_i32_1 : i32, i32, i32
  }
  func.func @transform_4(%arg0: i32, %arg1: i32) -> (i32, i32) {
    %c0_i32 = arith.constant 0 : i32
    %c0_i32_0 = arith.constant 0 : i32
    %c0_i32_1 = arith.constant 0 : i32
    return %c0_i32, %c0_i32_0 : i32, i32
  }
  func.func @transform_5(%arg0: i32, %arg1: i32) -> (i32, i32) {
    %c0_i32 = arith.constant 0 : i32
    %c0_i32_0 = arith.constant 0 : i32
    return %arg0, %c0_i32 : i32, i32
  }
}

</mosaic_0001>

<llo_original>
// kernel: tpu_custom_call.1
$region0: #{tpu_custom_call.1}
  #allocation0 [shape = 'u32[]', space=smem, size = 0x4, offset = 0x4, fixed_abs, tag = 'smem constant byte address 0x4 - core index']
  #allocation1 [shape = 'u32[144,128]{1,0:T(1,128)}', space=vmem, size = 0x12000, scoped, tag = 'internal scratch']
  %s0 = inlined_call_operand.vmem [shape: bf16[32,64], index: 0, kind: input, shape index: {}]
  %s1 = inlined_call_operand.vmem [shape: bf16[1,64,256], index: 1, kind: input, shape index: {}]
  %s2 = inlined_call_operand.vmem [shape: f32[1,1,256], index: 2, kind: input, shape index: {}]
  %s3 = inlined_call_operand.vmem [shape: bf16[1,256,64], index: 3, kind: input, shape index: {}]
  %s4 = inlined_call_operand.vmem [shape: f32[1,64], index: 4, kind: input, shape index: {}]
  %s5 = inlined_call_operand.hbm [shape: f32[32,64], index: 5, kind: output, shape index: {}]
  %s6 = sld [smem:[#allocation0]]
  $region38: #{tpu_custom_call.1} parent=0
    _
  %s8 = ssub.s32 1, %s6
  %s9 = scalar_select 0, %s8, %s6
  $region1: #{tpu_custom_call.1} parent=0
    #allocation2 [shape = 'u8[16384]{0}', space=vmem, size = 0x4000, scoped, tag = 'output window, operand 0, single buffered']
    #allocation3 [shape = 's32[1]{0}', space=sflag, size = 0x4, scoped, tag = 'scoped memory for tpu_custom_call.1']
    %10 = vsyncpa [#allocation3], 0
    // Predicated region
    $region2: #{tpu_custom_call.1} parent=1 // pred_check
      _
    $region3: #{tpu_custom_call.1} parent=1 // pred_check_branch
      %12 = sbr.rel (0) target = $region5
    $region4: #{tpu_custom_call.1} parent=1 // pred_region
      _
    $region5: #{tpu_custom_call.1} parent=1 // pred_fallthru
      _
    // Predicated region
    $region6: #{tpu_custom_call.1} parent=1 // pred_check
      _
    $region7: #{tpu_custom_call.1} parent=1 // pred_check_branch
      %14 = sbr.rel (0) target = $region9
    $region8: #{tpu_custom_call.1} parent=1 // pred_region
      _
    $region9: #{tpu_custom_call.1} parent=1 // pred_fallthru
      _
    // Predicated region
    $region10: #{tpu_custom_call.1} parent=1 // pred_check
      _
    $region11: #{tpu_custom_call.1} parent=1 // pred_check_branch
      %16 = sbr.rel (0) target = $region13
    $region12: #{tpu_custom_call.1} parent=1 // pred_region
      _
    $region13: #{tpu_custom_call.1} parent=1 // pred_fallthru
      _
    // Predicated region
    $region14: #{tpu_custom_call.1} parent=1 // pred_check
      _
    $region15: #{tpu_custom_call.1} parent=1 // pred_check_branch
      %18 = sbr.rel (0) target = $region17
    $region16: #{tpu_custom_call.1} parent=1 // pred_region
      _
    $region17: #{tpu_custom_call.1} parent=1 // pred_fallthru
      _
    // Predicated region
    $region18: #{tpu_custom_call.1} parent=1 // pred_check
      _
    $region19: #{tpu_custom_call.1} parent=1 // pred_check_branch
      %20 = sbr.rel (0) target = $region21
    $region20: #{tpu_custom_call.1} parent=1 // pred_region
      _
    $region21: #{tpu_custom_call.1} parent=1 // pred_fallthru
      _
    %p22 = scmp.eq.s32.totalorder 0, 0
    // Predicated region
    $region22: #{tpu_custom_call.1} parent=1 // pred_check
      %p23 = pneg %p22
    $region23: #{tpu_custom_call.1} parent=1 // pred_check_branch
      %25 = sbr.rel (%p23) target = $region25
    $region24: #{tpu_custom_call.1} parent=1 // pred_region
      %vm26 = vcmask 523264
      %27 = vst.msk [vmem:[#allocation2] sm:$0xff] %vm26, 0.0
      %28 = vst.msk [vmem:[#allocation2 + $0x8] sm:$0xff] %vm26, 0.0
      %29 = vst.msk [vmem:[#allocation2 + $0x10] sm:$0xff] %vm26, 0.0
      %30 = vst.msk [vmem:[#allocation2 + $0x18] sm:$0xff] %vm26, 0.0
    $region25: #{tpu_custom_call.1} parent=1 // pred_fallthru
      _
    %s31 = smul.u32 0, 16
    %s32 = smul.addr %s31, 4
    %s33 = scalar_lea.vmem %s1, %s32
    %v34 = vld [vmem:[%s33] sm:$0xff]
    %v35 = vld [vmem:[%s33 + $0x8] sm:$0xff]
    %v36 = vld [vmem:[%s33 + $0x10] sm:$0xff]
    %v37 = vld [vmem:[%s33 + $0x18] sm:$0xff]
    %v38 = vld [vmem:[%s33 + $0x20] sm:$0xff]
    %v39 = vld [vmem:[%s33 + $0x28] sm:$0xff]
    %v40 = vld [vmem:[%s33 + $0x30] sm:$0xff]
    %v41 = vld [vmem:[%s33 + $0x38] sm:$0xff]
    %s42 = smul.u32 0, 2
    %s43 = scalar_lea.vmem %s2, %s42
    %v44 = vld [vmem:[%s43] sm:$0x3]
    %s45 = smul.u32 0, 32
    %s46 = smul.addr %s45, 4
    %s47 = scalar_lea.vmem %s3, %s46
    %v48 = vld [vmem:[%s47] sm:$0xf]
    %v49 = vld [vmem:[%s47 + $0x4] sm:$0xf]
    %v50 = vld [vmem:[%s47 + $0x8] sm:$0xf]
    %v51 = vld [vmem:[%s47 + $0xc] sm:$0xf]
    %v52 = vld [vmem:[%s47 + $0x10] sm:$0xf]
    %v53 = vld [vmem:[%s47 + $0x14] sm:$0xf]
    %v54 = vld [vmem:[%s47 + $0x18] sm:$0xf]
    %v55 = vld [vmem:[%s47 + $0x1c] sm:$0xf]
    %v56 = vld [vmem:[%s47 + $0x20] sm:$0xf]
    %v57 = vld [vmem:[%s47 + $0x24] sm:$0xf]
    %v58 = vld [vmem:[%s47 + $0x28] sm:$0xf]
    %v59 = vld [vmem:[%s47 + $0x2c] sm:$0xf]
    %v60 = vld [vmem:[%s47 + $0x30] sm:$0xf]
    %v61 = vld [vmem:[%s47 + $0x34] sm:$0xf]
    %v62 = vld [vmem:[%s47 + $0x38] sm:$0xf]
    %v63 = vld [vmem:[%s47 + $0x3c] sm:$0xf]
    %v64 = vld [vmem:[%s47 + $0x40] sm:$0xf]
    %v65 = vld [vmem:[%s47 + $0x44] sm:$0xf]
    %v66 = vld [vmem:[%s47 + $0x48] sm:$0xf]
    %v67 = vld [vmem:[%s47 + $0x4c] sm:$0xf]
    %v68 = vld [vmem:[%s47 + $0x50] sm:$0xf]
    %v69 = vld [vmem:[%s47 + $0x54] sm:$0xf]
    %v70 = vld [vmem:[%s47 + $0x58] sm:$0xf]
    %v71 = vld [vmem:[%s47 + $0x5c] sm:$0xf]
    %v72 = vld [vmem:[%s47 + $0x60] sm:$0xf]
    %v73 = vld [vmem:[%s47 + $0x64] sm:$0xf]
    %v74 = vld [vmem:[%s47 + $0x68] sm:$0xf]
    %v75 = vld [vmem:[%s47 + $0x6c] sm:$0xf]
    %v76 = vld [vmem:[%s47 + $0x70] sm:$0xf]
    %v77 = vld [vmem:[%s47 + $0x74] sm:$0xf]
    %v78 = vld [vmem:[%s47 + $0x78] sm:$0xf]
    %v79 = vld [vmem:[%s47 + $0x7c] sm:$0xf]
    %v80 = vld [vmem:[%s0] sm:$0xf]
    %v81 = vld [vmem:[%s0 + $0x4] sm:$0xf]
    %v82 = vld [vmem:[%s0 + $0x8] sm:$0xf]
    %v83 = vld [vmem:[%s0 + $0xc] sm:$0xf]
    %v85 = vlaneseq
    %v86 = vshrl.u32 %v85, 7
    %v87 = vsub.s32 0, %v86
    %v88 = vrot.slane %v44, %v87
    %v89 = vlaneseq
    %v90 = vshrl.u32 %v89, 7
    %v91 = vsub.s32 1, %v90
    %v92 = vrot.slane %v44, %v91
    %v99 = vunpack.c.l.b16 %v80
    %v100 = vunpack.c.l.b16 %v81
    %v101 = vunpack.c.l.b16 %v82
    %v102 = vunpack.c.l.b16 %v83
    %v103 = vpack.c.b16 %v100, %v99
    %v104 = vpack.c.b16 %v102, %v101
    %v113 = vunpack.c.l.b16 %v34
    %v114 = vunpack.c.h.b16 %v34
    %v115 = vunpack.c.l.b16 %v35
    %v116 = vunpack.c.h.b16 %v35
    %v117 = vunpack.c.l.b16 %v36
    %v118 = vunpack.c.h.b16 %v36
    %v119 = vunpack.c.l.b16 %v37
    %v120 = vunpack.c.h.b16 %v37
    %v121 = vunpack.c.l.b16 %v38
    %v122 = vunpack.c.h.b16 %v38
    %v123 = vunpack.c.l.b16 %v39
    %v124 = vunpack.c.h.b16 %v39
    %v125 = vunpack.c.l.b16 %v40
    %v126 = vunpack.c.h.b16 %v40
    %v127 = vunpack.c.l.b16 %v41
    %v128 = vunpack.c.h.b16 %v41
    %v129 = vpack.c.b16 %v115, %v113
    %v130 = vpack.c.b16 %v116, %v114
    %v131 = vpack.c.b16 %v119, %v117
    %v132 = vpack.c.b16 %v120, %v118
    %v133 = vpack.c.b16 %v123, %v121
    %v134 = vpack.c.b16 %v124, %v122
    %v135 = vpack.c.b16 %v127, %v125
    %v136 = vpack.c.b16 %v128, %v126
    %vm145 = vcmask 523264
    %v147 = vsel %vm145, %v103, 0
    %v150 = vsel %vm145, %v104, 0
    %152 = vmatprep.subr.bf16.mxu0 %v130
    %153 = vmatpush1.bf16.msra.mxu0 %v129
    %154 = vmatprep.subr.bf16.mxu0 %v132
    %155 = vmatpush1.bf16.msra.mxu0 %v131
    %156 = vmatprep.subr.bf16.mxu0 %v134
    %157 = vmatpush1.bf16.msra.mxu0 %v133
    %158 = vmatprep.subr.bf16.mxu0 %v136
    %159 = vmatpush1.bf16.msra.mxu0 %v135
    %160 = vmatprep.subr.bf16.mxu0 0
    %161 = vmatpush1.bf16.msra.mxu0 0
    %162 = vmatprep.subr.bf16.mxu0 0
    %163 = vmatpush1.bf16.msra.mxu0 0
    %164 = vmatprep.subr.bf16.mxu0 0
    %165 = vmatpush1.bf16.msra.mxu0 0
    %166 = vmatprep.subr.bf16.mxu0 0
    %167 = vmatpush1.bf16.msra.mxu0 0
    %168 = vmatprep.subr.bf16.mxu0 0
    %169 = vmatpush1.bf16.msra.mxu0 0
    %170 = vmatprep.subr.bf16.mxu0 0
    %171 = vmatpush1.bf16.msra.mxu0 0
    %172 = vmatprep.subr.bf16.mxu0 0
    %173 = vmatpush1.bf16.msra.mxu0 0
    %174 = vmatprep.subr.bf16.mxu0 0
    %175 = vmatpush1.bf16.msra.mxu0 0
    %176 = vmatprep.subr.bf16.mxu0 0
    %177 = vmatpush1.bf16.msra.mxu0 0
    %178 = vmatprep.subr.bf16.mxu0 0
    %179 = vmatpush1.bf16.msra.mxu0 0
    %180 = vmatprep.subr.bf16.mxu0 0
    %181 = vmatpush1.bf16.msra.mxu0 0
    %182 = vmatprep.subr.bf16.mxu0 0
    %183 = vmatpush1.bf16.msra.mxu0 0
    %184 = vmatprep.mubr.bf16.mxu0 0
    %185 = vmatmul.mubr.bf16.gmra.mrb[0].mxu0 %v147
    %v186 = vpop.f32.mrb[0].mxu0
    %v187 = vadd.f32 %v88, %v186
    %v188 = vpop.f32.mrb[0].mxu0
    %v189 = vadd.f32 %v92, %v188
    %v190 = vpop.f32.mrb[0].mxu0
    %v191 = vadd.f32 %v88, %v190
    %v192 = vpop.f32.mrb[0].mxu0
    %v193 = vadd.f32 %v92, %v192
    %194 = vmatprep.mubr.bf16.mxu0 0
    %195 = vmatmul.mubr.bf16.gmra.mrb[0].mxu0 %v150
    %v196 = vpop.f32.mrb[0].mxu0
    %v197 = vadd.f32 %v88, %v196
    %v198 = vpop.f32.mrb[0].mxu0
    %v199 = vadd.f32 %v92, %v198
    %v200 = vpop.f32.mrb[0].mxu0
    %v201 = vadd.f32 %v88, %v200
    %v202 = vpop.f32.mrb[0].mxu0
    %v203 = vadd.f32 %v92, %v202
    %204 = vdwg.mxu0
    %v205 = vmul.f32 %v187, 0.70710677
    %v206 = vmul.f32 %v189, 0.70710677
    %v207 = vmul.f32 %v191, 0.70710677
    %v208 = vmul.f32 %v193, 0.70710677
    %v209 = vmul.f32 %v197, 0.70710677
    %v210 = vmul.f32 %v199, 0.70710677
    %v211 = vmul.f32 %v201, 0.70710677
    %v212 = vmul.f32 %v203, 0.70710677
    %v213 = vand.u32 2147483647, %v205
    %v214 = vand.u32 2147483647, %v206
    %v215 = vand.u32 2147483647, %v207
    %v216 = vand.u32 2147483647, %v208
    %v217 = vand.u32 2147483647, %v209
    %v218 = vand.u32 2147483647, %v210
    %v219 = vand.u32 2147483647, %v211
    %v220 = vand.u32 2147483647, %v212
    %v221 = vmul.f32 %v213, 0.3275911
    %v222 = vmul.f32 %v214, 0.3275911
    %v223 = vmul.f32 %v215, 0.3275911
    %v224 = vmul.f32 %v216, 0.3275911
    %v225 = vmul.f32 %v217, 0.3275911
    %v226 = vmul.f32 %v218, 0.3275911
    %v227 = vmul.f32 %v219, 0.3275911
    %v228 = vmul.f32 %v220, 0.3275911
    %v229 = vadd.f32 %v221, 1.0
    %v230 = vadd.f32 %v222, 1.0
    %v231 = vadd.f32 %v223, 1.0
    %v232 = vadd.f32 %v224, 1.0
    %v233 = vadd.f32 %v225, 1.0
    %v234 = vadd.f32 %v226, 1.0
    %v235 = vadd.f32 %v227, 1.0
    %v236 = vadd.f32 %v228, 1.0
    %v237 = vrcp.pop %v229
    %v238 = vrcp.pop %v230
    %v239 = vrcp.pop %v231
    %v240 = vrcp.pop %v232
    %v241 = vrcp.pop %v233
    %v242 = vrcp.pop %v234
    %v243 = vrcp.pop %v235
    %v244 = vrcp.pop %v236
    %v245 = vmul.f32 %v237, 1.0614054
    %v246 = vmul.f32 %v238, 1.0614054
    %v247 = vmul.f32 %v239, 1.0614054
    %v248 = vmul.f32 %v240, 1.0614054
    %v249 = vmul.f32 %v241, 1.0614054
    %v250 = vmul.f32 %v242, 1.0614054
    %v251 = vmul.f32 %v243, 1.0614054
    %v252 = vmul.f32 %v244, 1.0614054
    %v253 = vadd.f32 %v245, -1.4531521
    %v254 = vadd.f32 %v246, -1.4531521
    %v255 = vadd.f32 %v247, -1.4531521
    %v256 = vadd.f32 %v248, -1.4531521
    %v257 = vadd.f32 %v249, -1.4531521
    %v258 = vadd.f32 %v250, -1.4531521
    %v259 = vadd.f32 %v251, -1.4531521
    %v260 = vadd.f32 %v252, -1.4531521
    %v261 = vmul.f32 %v237, %v253
    %v262 = vmul.f32 %v238, %v254
    %v263 = vmul.f32 %v239, %v255
    %v264 = vmul.f32 %v240, %v256
    %v265 = vmul.f32 %v241, %v257
    %v266 = vmul.f32 %v242, %v258
    %v267 = vmul.f32 %v243, %v259
    %v268 = vmul.f32 %v244, %v260
    %v269 = vadd.f32 %v261, 1.4214138
    %v270 = vadd.f32 %v262, 1.4214138
    %v271 = vadd.f32 %v263, 1.4214138
    %v272 = vadd.f32 %v264, 1.4214138
    %v273 = vadd.f32 %v265, 1.4214138
    %v274 = vadd.f32 %v266, 1.4214138
    %v275 = vadd.f32 %v267, 1.4214138
    %v276 = vadd.f32 %v268, 1.4214138
    %v277 = vmul.f32 %v237, %v269
    %v278 = vmul.f32 %v238, %v270
    %v279 = vmul.f32 %v239, %v271
    %v280 = vmul.f32 %v240, %v272
    %v281 = vmul.f32 %v241, %v273
    %v282 = vmul.f32 %v242, %v274
    %v283 = vmul.f32 %v243, %v275
    %v284 = vmul.f32 %v244, %v276
    %v285 = vadd.f32 %v277, -0.28449672
    %v286 = vadd.f32 %v278, -0.28449672
    %v287 = vadd.f32 %v279, -0.28449672
    %v288 = vadd.f32 %v280, -0.28449672
    %v289 = vadd.f32 %v281, -0.28449672
    %v290 = vadd.f32 %v282, -0.28449672
    %v291 = vadd.f32 %v283, -0.28449672
    %v292 = vadd.f32 %v284, -0.28449672
    %v293 = vmul.f32 %v237, %v285
    %v294 = vmul.f32 %v238, %v286
    %v295 = vmul.f32 %v239, %v287
    %v296 = vmul.f32 %v240, %v288
    %v297 = vmul.f32 %v241, %v289
    %v298 = vmul.f32 %v242, %v290
    %v299 = vmul.f32 %v243, %v291
    %v300 = vmul.f32 %v244, %v292
    %v301 = vadd.f32 %v293, 0.2548296
    %v302 = vadd.f32 %v294, 0.2548296
    %v303 = vadd.f32 %v295, 0.2548296
    %v304 = vadd.f32 %v296, 0.2548296
    %v305 = vadd.f32 %v297, 0.2548296
    %v306 = vadd.f32 %v298, 0.2548296
    %v307 = vadd.f32 %v299, 0.2548296
    %v308 = vadd.f32 %v300, 0.2548296
    %v309 = vmul.f32 %v237, %v301
    %v310 = vmul.f32 %v238, %v302
    %v311 = vmul.f32 %v239, %v303
    %v312 = vmul.f32 %v240, %v304
    %v313 = vmul.f32 %v241, %v305
    %v314 = vmul.f32 %v242, %v306
    %v315 = vmul.f32 %v243, %v307
    %v316 = vmul.f32 %v244, %v308
    %v317 = vsub.f32 0.0, %v213
    %v318 = vsub.f32 0.0, %v214
    %v319 = vsub.f32 0.0, %v215
    %v320 = vsub.f32 0.0, %v216
    %v321 = vsub.f32 0.0, %v217
    %v322 = vsub.f32 0.0, %v218
    %v323 = vsub.f32 0.0, %v219
    %v324 = vsub.f32 0.0, %v220
    %v325 = vmul.f32 %v317, %v213
    %v326 = vmul.f32 %v318, %v214
    %v327 = vmul.f32 %v319, %v215
    %v328 = vmul.f32 %v320, %v216
    %v329 = vmul.f32 %v321, %v217
    %v330 = vmul.f32 %v322, %v218
    %v331 = vmul.f32 %v323, %v219
    %v332 = vmul.f32 %v324, %v220
    %v333 = vmul.f32 %v325, 1.442695
    %v334 = vpow.pop %v333
    %v335 = vmul.f32 %v326, 1.442695
    %v336 = vpow.pop %v335
    %v337 = vmul.f32 %v327, 1.442695
    %v338 = vpow.pop %v337
    %v339 = vmul.f32 %v328, 1.442695
    %v340 = vpow.pop %v339
    %v341 = vmul.f32 %v329, 1.442695
    %v342 = vpow.pop %v341
    %v343 = vmul.f32 %v330, 1.442695
    %v344 = vpow.pop %v343
    %v345 = vmul.f32 %v331, 1.442695
    %v346 = vpow.pop %v345
    %v347 = vmul.f32 %v332, 1.442695
    %v348 = vpow.pop %v347
    %v349 = vmul.f32 %v309, %v334
    %v350 = vmul.f32 %v310, %v336
    %v351 = vmul.f32 %v311, %v338
    %v352 = vmul.f32 %v312, %v340
    %v353 = vmul.f32 %v313, %v342
    %v354 = vmul.f32 %v314, %v344
    %v355 = vmul.f32 %v315, %v346
    %v356 = vmul.f32 %v316, %v348
    %v357 = vsub.f32 1.0, %v349
    %v358 = vsub.f32 1.0, %v350
    %v359 = vsub.f32 1.0, %v351
    %v360 = vsub.f32 1.0, %v352
    %v361 = vsub.f32 1.0, %v353
    %v362 = vsub.f32 1.0, %v354
    %v363 = vsub.f32 1.0, %v355
    %v364 = vsub.f32 1.0, %v356
    %vm365 = vcmp.lt.f32.partialorder %v205, 0.0
    %vm366 = vcmp.lt.f32.partialorder %v206, 0.0
    %vm367 = vcmp.lt.f32.partialorder %v207, 0.0
    %vm368 = vcmp.lt.f32.partialorder %v208, 0.0
    %vm369 = vcmp.lt.f32.partialorder %v209, 0.0
    %vm370 = vcmp.lt.f32.partialorder %v210, 0.0
    %vm371 = vcmp.lt.f32.partialorder %v211, 0.0
    %vm372 = vcmp.lt.f32.partialorder %v212, 0.0
    %v373 = vsub.f32 0.0, %v357
    %v374 = vsub.f32 0.0, %v358
    %v375 = vsub.f32 0.0, %v359
    %v376 = vsub.f32 0.0, %v360
    %v377 = vsub.f32 0.0, %v361
    %v378 = vsub.f32 0.0, %v362
    %v379 = vsub.f32 0.0, %v363
    %v380 = vsub.f32 0.0, %v364
    %v381 = vsel %vm365, %v373, %v357
    %v382 = vsel %vm366, %v374, %v358
    %v383 = vsel %vm367, %v375, %v359
    %v384 = vsel %vm368, %v376, %v360
    %v385 = vsel %vm369, %v377, %v361
    %v386 = vsel %vm370, %v378, %v362
    %v387 = vsel %vm371, %v379, %v363
    %v388 = vsel %vm372, %v380, %v364
    %v389 = vmul.f32 %v187, 0.5
    %v390 = vmul.f32 %v189, 0.5
    %v391 = vmul.f32 %v191, 0.5
    %v392 = vmul.f32 %v193, 0.5
    %v393 = vmul.f32 %v197, 0.5
    %v394 = vmul.f32 %v199, 0.5
    %v395 = vmul.f32 %v201, 0.5
    %v396 = vmul.f32 %v203, 0.5
    %v397 = vadd.f32 %v381, 1.0
    %v398 = vadd.f32 %v382, 1.0
    %v399 = vadd.f32 %v383, 1.0
    %v400 = vadd.f32 %v384, 1.0
    %v401 = vadd.f32 %v385, 1.0
    %v402 = vadd.f32 %v386, 1.0
    %v403 = vadd.f32 %v387, 1.0
    %v404 = vadd.f32 %v388, 1.0
    %v405 = vmul.f32 %v389, %v397
    %v406 = vmul.f32 %v390, %v398
    %v407 = vmul.f32 %v391, %v399
    %v408 = vmul.f32 %v392, %v400
    %v409 = vmul.f32 %v393, %v401
    %v410 = vmul.f32 %v394, %v402
    %v411 = vmul.f32 %v395, %v403
    %v412 = vmul.f32 %v396, %v404
    %v413 = vld [vmem:[#allocation2] sm:$0xff]
    %v414 = vld [vmem:[#allocation2 + $0x8] sm:$0xff]
    %v415 = vld [vmem:[#allocation2 + $0x10] sm:$0xff]
    %v416 = vld [vmem:[#allocation2 + $0x18] sm:$0xff]
    %v417 = vpack.c.bf16 %v407, %v405
    %v418 = vpack.c.bf16 %v408, %v406
    %v419 = vpack.c.bf16 %v411, %v409
    %v420 = vpack.c.bf16 %v412, %v410
    %v453 = vunpack.c.l.b16 %v48
    %v454 = vunpack.c.l.b16 %v49
    %v455 = vunpack.c.l.b16 %v50
    %v456 = vunpack.c.l.b16 %v51
    %v457 = vunpack.c.l.b16 %v52
    %v458 = vunpack.c.l.b16 %v53
    %v459 = vunpack.c.l.b16 %v54
    %v460 = vunpack.c.l.b16 %v55
    %v461 = vunpack.c.l.b16 %v56
    %v462 = vunpack.c.l.b16 %v57
    %v463 = vunpack.c.l.b16 %v58
    %v464 = vunpack.c.l.b16 %v59
    %v465 = vunpack.c.l.b16 %v60
    %v466 = vunpack.c.l.b16 %v61
    %v467 = vunpack.c.l.b16 %v62
    %v468 = vunpack.c.l.b16 %v63
    %v469 = vunpack.c.l.b16 %v64
    %v470 = vunpack.c.l.b16 %v65
    %v471 = vunpack.c.l.b16 %v66
    %v472 = vunpack.c.l.b16 %v67
    %v473 = vunpack.c.l.b16 %v68
    %v474 = vunpack.c.l.b16 %v69
    %v475 = vunpack.c.l.b16 %v70
    %v476 = vunpack.c.l.b16 %v71
    %v477 = vunpack.c.l.b16 %v72
    %v478 = vunpack.c.l.b16 %v73
    %v479 = vunpack.c.l.b16 %v74
    %v480 = vunpack.c.l.b16 %v75
    %v481 = vunpack.c.l.b16 %v76
    %v482 = vunpack.c.l.b16 %v77
    %v483 = vunpack.c.l.b16 %v78
    %v484 = vunpack.c.l.b16 %v79
    %v485 = vpack.c.b16 %v454, %v453
    %v486 = vpack.c.b16 %v456, %v455
    %v487 = vpack.c.b16 %v458, %v457
    %v488 = vpack.c.b16 %v460, %v459
    %v489 = vpack.c.b16 %v462, %v461
    %v490 = vpack.c.b16 %v464, %v463
    %v491 = vpack.c.b16 %v466, %v465
    %v492 = vpack.c.b16 %v468, %v467
    %v493 = vpack.c.b16 %v470, %v469
    %v494 = vpack.c.b16 %v472, %v471
    %v495 = vpack.c.b16 %v474, %v473
    %v496 = vpack.c.b16 %v476, %v475
    %v497 = vpack.c.b16 %v478, %v477
    %v498 = vpack.c.b16 %v480, %v479
    %v499 = vpack.c.b16 %v482, %v481
    %v500 = vpack.c.b16 %v484, %v483
    %517 = vmatprep.subr.bf16.mxu0 0
    %518 = vmatpush1.bf16.msra.mxu0 %v485
    %519 = vmatprep.subr.bf16.mxu0 0
    %520 = vmatpush1.bf16.msra.mxu0 %v486
    %521 = vmatprep.subr.bf16.mxu0 0
    %522 = vmatpush1.bf16.msra.mxu0 %v487
    %523 = vmatprep.subr.bf16.mxu0 0
    %524 = vmatpush1.bf16.msra.mxu0 %v488
    %525 = vmatprep.subr.bf16.mxu0 0
    %526 = vmatpush1.bf16.msra.mxu0 %v489
    %527 = vmatprep.subr.bf16.mxu0 0
    %528 = vmatpush1.bf16.msra.mxu0 %v490
    %529 = vmatprep.subr.bf16.mxu0 0
    %530 = vmatpush1.bf16.msra.mxu0 %v491
    %531 = vmatprep.subr.bf16.mxu0 0
    %532 = vmatpush1.bf16.msra.mxu0 %v492
    %533 = vmatprep.subr.bf16.mxu0 0
    %534 = vmatpush1.bf16.msra.mxu0 %v493
    %535 = vmatprep.subr.bf16.mxu0 0
    %536 = vmatpush1.bf16.msra.mxu0 %v494
    %537 = vmatprep.subr.bf16.mxu0 0
    %538 = vmatpush1.bf16.msra.mxu0 %v495
    %539 = vmatprep.subr.bf16.mxu0 0
    %540 = vmatpush1.bf16.msra.mxu0 %v496
    %541 = vmatprep.subr.bf16.mxu0 0
    %542 = vmatpush1.bf16.msra.mxu0 %v497
    %543 = vmatprep.subr.bf16.mxu0 0
    %544 = vmatpush1.bf16.msra.mxu0 %v498
    %545 = vmatprep.subr.bf16.mxu0 0
    %546 = vmatpush1.bf16.msra.mxu0 %v499
    %547 = vmatprep.subr.bf16.mxu0 0
    %548 = vmatpush1.bf16.msra.mxu0 %v500
    %549 = vmatprep.mubr.bf16.mxu0 %v418
    %550 = vmatmul.mubr.bf16.gmra.mrb[0].mxu0 %v417
    %v551 = vpop.f32.mrb[0].mxu0
    %v552 = vadd.f32 0.0, %v551
    %v553 = vpop.f32.mrb[0].mxu0
    %v554 = vpop.f32.mrb[0].mxu0
    %v555 = vadd.f32 0.0, %v554
    %v556 = vpop.f32.mrb[0].mxu0
    %557 = vmatprep.mubr.bf16.mxu0 %v420
    %558 = vmatmul.mubr.bf16.gmra.mrb[0].mxu0 %v419
    %v559 = vpop.f32.mrb[0].mxu0
    %v560 = vadd.f32 0.0, %v559
    %v561 = vpop.f32.mrb[0].mxu0
    %v562 = vpop.f32.mrb[0].mxu0
    %v563 = vadd.f32 0.0, %v562
    %v564 = vpop.f32.mrb[0].mxu0
    %565 = vdwg.mxu0
    %v566 = vadd.f32 %v413, %v552
    %v567 = vadd.f32 %v414, %v555
    %v568 = vadd.f32 %v415, %v560
    %v569 = vadd.f32 %v416, %v563
    %570 = vst.msk [vmem:[#allocation2] sm:$0xff] %vm145, %v566
    %571 = vst.msk [vmem:[#allocation2 + $0x8] sm:$0xff] %vm145, %v567
    %572 = vst.msk [vmem:[#allocation2 + $0x10] sm:$0xff] %vm145, %v568
    %573 = vst.msk [vmem:[#allocation2 + $0x18] sm:$0xff] %vm145, %v569
    // Predicated region
    $region26: #{tpu_custom_call.1} parent=1 // pred_check
      %p574 = pneg %p22
    $region27: #{tpu_custom_call.1} parent=1 // pred_check_branch
      %576 = sbr.rel (%p574) target = $region29
    $region28: #{tpu_custom_call.1} parent=1 // pred_region
      %v577 = vld [vmem:[#allocation2] sm:$0xff]
      %v578 = vld [vmem:[#allocation2 + $0x8] sm:$0xff]
      %v579 = vld [vmem:[#allocation2 + $0x10] sm:$0xff]
      %v580 = vld [vmem:[#allocation2 + $0x18] sm:$0xff]
      %v581 = vld [vmem:[%s4] sm:$0x1]
      %v583 = vlaneseq
      %v584 = vshrl.u32 %v583, 7
      %v585 = vsub.s32 0, %v584
      %v586 = vrot.slane %v581, %v585
      %v588 = vadd.f32 %v577, %v586
      %v589 = vadd.f32 %v578, %v586
      %v590 = vadd.f32 %v579, %v586
      %v591 = vadd.f32 %v580, %v586
      %592 = vst.msk [vmem:[#allocation2] sm:$0xff] %vm145, %v588
      %593 = vst.msk [vmem:[#allocation2 + $0x8] sm:$0xff] %vm145, %v589
      %594 = vst.msk [vmem:[#allocation2 + $0x10] sm:$0xff] %vm145, %v590
      %595 = vst.msk [vmem:[#allocation2 + $0x18] sm:$0xff] %vm145, %v591
    $region29: #{tpu_custom_call.1} parent=1 // pred_fallthru
      _
    // Predicated region
    $region30: #{tpu_custom_call.1} parent=1 // pred_check
      _
    $region31: #{tpu_custom_call.1} parent=1 // pred_check_branch
      %597 = sbr.rel (0) target = $region33
    $region32: #{tpu_custom_call.1} parent=1 // pred_region
      %s599 = ssub.s32 512, 512
      %600 = vsyncadd [#allocation3], %s599
      %s601 = sshll.u32 [#allocation2], 4
      %s602 = int_to_ptr.vmem [resolvable:$true] %s601
      %607 = dma.vmem_to_hbm [thread:$0]  %s602, 512, %s5, [#allocation3], 128, 128, 8
    $region33: #{tpu_custom_call.1} parent=1 // pred_fallthru
      _
    // Predicated region
    $region34: #{tpu_custom_call.1} parent=1 // pred_check
      _
    $region35: #{tpu_custom_call.1} parent=1 // pred_check_branch
      %609 = sbr.rel (0) target = $region37
    $region36: #{tpu_custom_call.1} parent=1 // pred_region
      %610 = dma.done [#allocation3], 512
    $region37: #{tpu_custom_call.1} parent=1 // pred_fallthru
      _
    %611 = vsyncpa [#allocation3], 1

</llo_original>
